<compile_context>
chip_gen: v5e
topology: v5e:2x2
jax: 0.10.0
libtpu: 0.0.40
codegen_flags: <defaults>
</compile_context>

<pallas_src>
import functools

import jax
import jax.numpy as jnp
from jax.experimental import pallas as pl
from jax.experimental.pallas import tpu as pltpu

_LANES = 128   # one lane tile: hidden (64) and n_actions (4) both fit in it
_ALIGN = 16    # row alignment valid for both f32 (8-row) and bf16 (16-row) packing


def _round_up(x, m):
    return (x + m - 1) // m * m


def pack_params(w1, b1, w2, b2, *, dtype=jnp.bfloat16, mask_value=-1e30):
    """Pack W1, b1, W2, b2 into a single lane-padded (R, 128) slab.

    Row layout (all sections 16-row aligned):
      [0, obs)              : W1   (cols [0, hidden) real, rest 0)
      r_b1                  : b1   (cols [0, hidden) real, rest 0)
      [r_w2, r_w2 + 128)    : W2   (rows [0, hidden) x cols [0, A) real, rest 0)
      r_b2                  : b2   (cols [0, A) real, cols [A, 128) = mask_value)
    One array -> one HBM->VMEM DMA per pallas_call.
    """
    obs, hidden = w1.shape
    assert w2.shape[0] == hidden
    n_actions = w2.shape[1]
    assert hidden <= _LANES and n_actions <= _LANES

    r_b1 = _round_up(obs, _ALIGN)
    r_w2 = r_b1 + _ALIGN
    r_b2 = r_w2 + _LANES
    rows = r_b2 + _ALIGN

    slab = jnp.zeros((rows, _LANES), jnp.float32)
    slab = slab.at[:obs, :hidden].set(w1)
    slab = slab.at[r_b1, :hidden].set(jnp.reshape(b1, (hidden,)))
    slab = slab.at[r_w2:r_w2 + hidden, :n_actions].set(w2)
    slab = slab.at[r_b2, :].set(mask_value)
    slab = slab.at[r_b2, :n_actions].set(jnp.reshape(b2, (n_actions,)))

    layout = dict(obs=obs, hidden=hidden, n_actions=n_actions,
                  r_b1=r_b1, r_w2=r_w2, r_b2=r_b2)
    return slab.astype(dtype), layout


def _q_kernel(x_ref, w_ref, o_ref, *, obs, r_b1, r_w2, r_b2):
    cdt = w_ref.dtype                                     # bf16 -> native MXU path (v6e/v7x)

    # ---- fl1 + relu1 ----
    x = x_ref[...].astype(cdt)                            # (TB, obs)  cast in-kernel (no extra HBM pass)
    w1 = w_ref[0:obs, :]                                  # (obs, 128); lanes >= hidden are 0
    b1 = w_ref[r_b1:r_b1 + 1, :].astype(jnp.float32)      # (1, 128)
    h = jnp.dot(x, w1, preferred_element_type=jnp.float32) + b1
    h = jnp.maximum(h, 0.0)                               # f32 epilogue (v5e-safe)

    # ---- fl2 ----
    w2 = w_ref[r_w2:r_w2 + _LANES, :]                     # (128, 128); padded rows/cols are 0
    b2 = w_ref[r_b2:r_b2 + 1, :].astype(jnp.float32)      # (1, 128); padded lanes = -1e30 mask
    q = jnp.dot(h.astype(cdt), w2, preferred_element_type=jnp.float32) + b2

    # ---- softmax over dim=1 (padded action lanes -> exp == 0, so result is exact) ----
    m = jnp.max(q, axis=1, keepdims=True)
    e = jnp.exp(q - m)
    denom = jnp.sum(e, axis=1, keepdims=True)
    probs = e * pl.reciprocal(denom, approx=False)        # approx=False keeps row sums within 1e-5

    # Lane-dense store: full 128-lane tile, unmasked vst. Padded lanes are exactly 0;
    # the wrapper slices [:, :n_actions] outside the kernel.
    o_ref[...] = probs.astype(o_ref.dtype)


def q_network_forward(x, w_slab, layout, *, block_rows=2048):
    """x: (B, obs_size) f32 (or bf16); returns softmax probs (B, n_actions) f32."""
    B, obs = x.shape
    assert obs == layout["obs"]
    n_actions = layout["n_actions"]

    # Batch tile: multiple of 8 (16 if x is sub-32-bit), as large as block_rows,
    # but capped near B/2 so a 2-TC chip (v7x) always has >= 2 grid steps to shard.
    align = 16 if jnp.dtype(x.dtype).itemsize < 4 else 8
    tb = min(block_rows, _round_up(B, align))
    half = _round_up(-(-B // 2), align)
    tb = min(tb, max(half, align))
    grid = (pl.cdiv(B, tb),)

    kernel = functools.partial(
        _q_kernel, obs=obs,
        r_b1=layout["r_b1"], r_w2=layout["r_w2"], r_b2=layout["r_b2"])

    cost = pl.CostEstimate(
        flops=2 * B * (obs * _LANES + _LANES * _LANES),
        transcendentals=B * _LANES,
        bytes_accessed=int(B * obs * jnp.dtype(x.dtype).itemsize
                           + w_slab.size * jnp.dtype(w_slab.dtype).itemsize
                           + B * _LANES * 4))

    out_padded = pl.pallas_call(
        kernel,
        out_shape=jax.ShapeDtypeStruct((B, _LANES), jnp.float32),  # lane-dense output
        grid=grid,
        in_specs=[
            pl.BlockSpec((tb, obs), lambda i: (i, 0)),        # stream batch tiles
            pl.BlockSpec(w_slab.shape, lambda i: (0, 0)),     # weights resident across grid steps
        ],
        out_specs=pl.BlockSpec((tb, _LANES), lambda i: (i, 0)),
        compiler_params=pltpu.CompilerParams(
            dimension_semantics=("parallel",)),               # shard batch across TCs (v7x megacore)
        cost_estimate=cost,
    )(x, w_slab)

    return out_padded[:, :n_actions]                          # padded lanes are exactly 0


def init_params(key, obs_size, hidden, n_actions):
    """Deterministic init mimicking PyTorch nn.Linear default U[-1/sqrt(fan_in), 1/sqrt(fan_in)]."""
    k1, k2, k3, k4 = jax.random.split(key, 4)
    bound1 = 1.0 / jnp.sqrt(jnp.float32(obs_size))
    bound2 = 1.0 / jnp.sqrt(jnp.float32(hidden))
    w1 = jax.random.uniform(k1, (obs_size, hidden), jnp.float32, -bound1, bound1)
    b1 = jax.random.uniform(k2, (hidden,), jnp.float32, -bound1, bound1)
    w2 = jax.random.uniform(k3, (hidden, n_actions), jnp.float32, -bound2, bound2)
    b2 = jax.random.uniform(k4, (n_actions,), jnp.float32, -bound2, bound2)
    return w1, b1, w2, b2


def _ref_forward(x, w1, b1, w2, b2):
    """Pure-JAX reference matching the kernel's bf16-input / f32-accumulation path."""
    hp = jax.lax.Precision.HIGHEST
    bf, f32 = jnp.bfloat16, jnp.float32
    xb = x.astype(bf).astype(f32)
    w1b, b1b = w1.astype(bf).astype(f32), b1.astype(bf).astype(f32)
    w2b, b2b = w2.astype(bf).astype(f32), b2.astype(bf).astype(f32)
    h = jnp.maximum(jnp.dot(xb, w1b, precision=hp) + b1b, 0.0)
    q = jnp.dot(h.astype(bf).astype(f32), w2b, precision=hp) + b2b
    return jax.nn.softmax(q, axis=1)


if __name__ == "__main__":
    key = jax.random.PRNGKey(0)
    B, OBS, HIDDEN, N_ACTIONS = 8, 32, 64, 4

    kx, kp, kx2 = jax.random.split(key, 3)
    x = jax.random.normal(kx, (B, OBS), dtype=jnp.float32)
    w1, b1, w2, b2 = init_params(kp, OBS, HIDDEN, N_ACTIONS)
    w_slab, layout = pack_params(w1, b1, w2, b2, dtype=jnp.bfloat16)

    # --- small single-block run ---
    out = q_network_forward(x, w_slab, layout)
    out = jax.block_until_ready(out)
    ref = _ref_forward(x, w1, b1, w2, b2)
    assert out.shape == (B, N_ACTIONS)
    assert jnp.allclose(out, ref, atol=1e-3, rtol=1e-3)
    assert jnp.allclose(jnp.sum(out, axis=1), 1.0, atol=1e-5)

    # --- exercise the batch grid (multi-step + partial last block + 2-TC split cap) ---
    B2 = 200
    x2 = jax.random.normal(kx2, (B2, OBS), dtype=jnp.float32)
    out2 = jax.block_until_ready(q_network_forward(x2, w_slab, layout, block_rows=64))
    ref2 = _ref_forward(x2, w1, b1, w2, b2)
    assert out2.shape == (B2, N_ACTIONS)
    assert jnp.allclose(out2, ref2, atol=1e-3, rtol=1e-3)
    assert jnp.allclose(jnp.sum(out2, axis=1), 1.0, atol=1e-5)

    # --- large-batch run with the default (2048-row) tile ---
    B3 = 4096
    x3 = jax.random.normal(jax.random.PRNGKey(3), (B3, OBS), dtype=jnp.float32)
    out3 = jax.block_until_ready(q_network_forward(x3, w_slab, layout))
    ref3 = _ref_forward(x3, w1, b1, w2, b2)
    assert out3.shape == (B3, N_ACTIONS)
    assert jnp.allclose(out3, ref3, atol=1e-3, rtol=1e-3)
    assert jnp.allclose(jnp.sum(out3, axis=1), 1.0, atol=1e-5)

    print("KERNEL_OK")
</pallas_src>

<mosaic_0001>
module attributes {stable_mosaic.version = 11 : i64} {
  func.func @_q_kernel(%arg0: i32, %arg1: memref<8x32xf32, #tpu.memory_space<vmem>>, %arg2: memref<192x128xbf16, #tpu.memory_space<vmem>>, %arg3: memref<8x128xf32, #tpu.memory_space<vmem>>) attributes {dimension_semantics = [#tpu.dimension_semantics<parallel>], iteration_bounds = array<i64: 1>, scalar_prefetch = 0 : i64, scratch_operands = 0 : i64, tpu.core_type = #tpu.core_type<tc>, window_params = [{transform_indices = @transform_0, window_bounds = array<i64: 8, 32>}, {pipeline_mode = #tpu.pipeline_mode<synchronous>, transform_indices = @transform_1, window_bounds = array<i64: 192, 128>}, {transform_indices = @transform_2, window_bounds = array<i64: 8, 128>}]} {
    %c0 = arith.constant 0 : index
    %c0_0 = arith.constant 0 : index
    %0 = vector.load %arg1[%c0, %c0_0] : memref<8x32xf32, #tpu.memory_space<vmem>>, vector<8x32xf32>
    %1 = arith.truncf %0 : vector<8x32xf32> to vector<8x32xbf16>
    %c0_1 = arith.constant 0 : index
    %c0_2 = arith.constant 0 : index
    %2 = vector.load %arg2[%c0_1, %c0_2] : memref<192x128xbf16, #tpu.memory_space<vmem>>, vector<32x128xbf16>
    %c32 = arith.constant 32 : index
    %c0_3 = arith.constant 0 : index
    %3 = vector.load %arg2[%c32, %c0_3] : memref<192x128xbf16, #tpu.memory_space<vmem>>, vector<1x128xbf16>
    %4 = arith.extf %3 : vector<1x128xbf16> to vector<1x128xf32>
    %cst = arith.constant dense<0.000000e+00> : vector<8x128xf32>
    %5 = tpu.matmul %1, %2, %cst {dimension_numbers = #tpu.dot_dimension_numbers<[1], [0], [0], [1], [0, 0, 1, 1], [], []>} : vector<8x32xbf16>, vector<32x128xbf16>, vector<8x128xf32> -> vector<8x128xf32>
    %6 = vector.broadcast %4 : vector<1x128xf32> to vector<8x128xf32>
    %7 = arith.addf %5, %6 : vector<8x128xf32>
    %cst_4 = arith.constant 0.000000e+00 : f32
    %8 = vector.broadcast %cst_4 : f32 to vector<8x128xf32>
    %9 = arith.maximumf %7, %8 : vector<8x128xf32>
    %c48 = arith.constant 48 : index
    %c0_5 = arith.constant 0 : index
    %10 = vector.load %arg2[%c48, %c0_5] : memref<192x128xbf16, #tpu.memory_space<vmem>>, vector<128x128xbf16>
    %c176 = arith.constant 176 : index
    %c0_6 = arith.constant 0 : index
    %11 = vector.load %arg2[%c176, %c0_6] : memref<192x128xbf16, #tpu.memory_space<vmem>>, vector<1x128xbf16>
    %12 = arith.extf %11 : vector<1x128xbf16> to vector<1x128xf32>
    %13 = arith.truncf %9 : vector<8x128xf32> to vector<8x128xbf16>
    %cst_7 = arith.constant dense<0.000000e+00> : vector<8x128xf32>
    %14 = tpu.matmul %13, %10, %cst_7 {dimension_numbers = #tpu.dot_dimension_numbers<[1], [0], [0], [1], [0, 0, 1, 1], [], []>} : vector<8x128xbf16>, vector<128x128xbf16>, vector<8x128xf32> -> vector<8x128xf32>
    %15 = vector.broadcast %12 : vector<1x128xf32> to vector<8x128xf32>
    %16 = arith.addf %14, %15 : vector<8x128xf32>
    %cst_8 = arith.constant dense<0xFF800000> : vector<8xf32>
    %17 = vector.multi_reduction <maximumf>, %16, %cst_8 [1] : vector<8x128xf32> to vector<8xf32>
    %18 = vector.shape_cast %17 : vector<8xf32> to vector<8x1xf32>
    %19 = vector.broadcast %18 : vector<8x1xf32> to vector<8x128xf32>
    %20 = arith.subf %16, %19 : vector<8x128xf32>
    %21 = math.exp %20 : vector<8x128xf32>
    %cst_9 = arith.constant dense<0.000000e+00> : vector<8xf32>
    %22 = vector.multi_reduction <add>, %21, %cst_9 [1] : vector<8x128xf32> to vector<8xf32>
    %23 = vector.shape_cast %22 : vector<8xf32> to vector<8x1xf32>
    %24 = tpu.reciprocal %23 : vector<8x1xf32> -> vector<8x1xf32>
    %25 = vector.broadcast %24 : vector<8x1xf32> to vector<8x128xf32>
    %26 = arith.mulf %21, %25 : vector<8x128xf32>
    %c0_10 = arith.constant 0 : index
    %c0_11 = arith.constant 0 : index
    %27 = vector.load %arg3[%c0_10, %c0_11] : memref<8x128xf32, #tpu.memory_space<vmem>>, vector<8x128xf32>
    tpu.vector_store %arg3[%c0_10, %c0_11], %26 {strides = array<i32>} : memref<8x128xf32, #tpu.memory_space<vmem>>, vector<8x128xf32>,
    return
  }
  func.func @transform_0(%arg0: i32) -> (i32, i32) {
    %c0_i32 = arith.constant 0 : i32
    %c0_i32_0 = arith.constant 0 : i32
    return %arg0, %c0_i32 : i32, i32
  }
  func.func @transform_1(%arg0: i32) -> (i32, i32) {
    %c0_i32 = arith.constant 0 : i32
    %c0_i32_0 = arith.constant 0 : i32
    %c0_i32_1 = arith.constant 0 : i32
    return %c0_i32, %c0_i32_0 : i32, i32
  }
  func.func @transform_2(%arg0: i32) -> (i32, i32) {
    %c0_i32 = arith.constant 0 : i32
    %c0_i32_0 = arith.constant 0 : i32
    return %arg0, %c0_i32 : i32, i32
  }
}

</mosaic_0001>

<llo_original>
// kernel: tpu_custom_call.1
$region0: #{tpu_custom_call.1}
  #allocation0 [shape = 'u32[]', space=smem, size = 0x4, offset = 0x4, fixed_abs, tag = 'smem constant byte address 0x4 - core index']
  #allocation1 [shape = 'u32[72,128]{1,0:T(1,128)}', space=vmem, size = 0x9000, scoped, tag = 'internal scratch']
  %s0 = inlined_call_operand.hbm [shape: f32[8,32], index: 0, kind: input, shape index: {}]
  %s1 = inlined_call_operand.hbm [shape: bf16[192,128], index: 1, kind: input, shape index: {}]
  %s2 = inlined_call_operand.hbm [shape: f32[8,128], index: 2, kind: output, shape index: {}]
  %s3 = sld [smem:[#allocation0]]
  $region26: #{tpu_custom_call.1} parent=0
    _
  %s5 = ssub.s32 1, %s3
  %s6 = scalar_select 0, %s5, %s3
  $region1: #{tpu_custom_call.1} parent=0
    #allocation2 [shape = 'u8[4096]{0}', space=vmem, size = 0x1000, scoped, tag = 'input window, operand 0, single buffered']
    #allocation3 [shape = 's32[1]{0}', space=sflag, size = 0x4, scoped, tag = 'scoped memory for tpu_custom_call.1']
    #allocation4 [shape = 's32[1]{0}', space=sflag, size = 0x4, scoped, tag = 'scoped memory for tpu_custom_call.1']
    #allocation5 [shape = 'u8[49152]{0}', space=vmem, size = 0xc000, scoped, tag = 'input window, operand 1, single buffered']
    #allocation6 [shape = 's32[1]{0}', space=sflag, size = 0x4, scoped, tag = 'scoped memory for tpu_custom_call.1']
    #allocation7 [shape = 'u8[4096]{0}', space=vmem, size = 0x1000, scoped, tag = 'output window, operand 0, single buffered']
    %7 = vsyncpa [#allocation3], 0
    %8 = vsyncpa [#allocation6], 0
    %9 = vsyncpa [#allocation4], 0
    // Predicated region
    $region2: #{tpu_custom_call.1} parent=1 // pred_check
      _
    $region3: #{tpu_custom_call.1} parent=1 // pred_check_branch
      %11 = sbr.rel (0) target = $region5
    $region4: #{tpu_custom_call.1} parent=1 // pred_region
      %13 = vsyncadd [#allocation3], 0
      %s15 = sshll.u32 %s0, 4
      %s16 = int_to_ptr.hbm [resolvable:$true] %s15
      %s17 = sshll.u32 [#allocation2], 4
      %s18 = int_to_ptr.vmem [resolvable:$true] %s17
      %20 = dma.hbm_to_vmem [thread:$0]  %s16, 128, %s18, [#allocation3]
    $region5: #{tpu_custom_call.1} parent=1 // pred_fallthru
      _
    // Predicated region
    $region6: #{tpu_custom_call.1} parent=1 // pred_check
      _
    $region7: #{tpu_custom_call.1} parent=1 // pred_check_branch
      %22 = sbr.rel (0) target = $region9
    $region8: #{tpu_custom_call.1} parent=1 // pred_region
      %24 = vsyncadd [#allocation6], 0
      %s25 = sshll.u32 %s1, 4
      %s26 = int_to_ptr.hbm [resolvable:$true] %s25
      %s27 = sshll.u32 [#allocation5], 4
      %s28 = int_to_ptr.vmem [resolvable:$true] %s27
      %33 = dma.hbm_to_vmem [thread:$0]  %s26, 1536, %s28, [#allocation6], 64, 64, 4
    $region9: #{tpu_custom_call.1} parent=1 // pred_fallthru
      _
    // Predicated region
    $region10: #{tpu_custom_call.1} parent=1 // pred_check
      _
    $region11: #{tpu_custom_call.1} parent=1 // pred_check_branch
      %35 = sbr.rel (0) target = $region13
    $region12: #{tpu_custom_call.1} parent=1 // pred_region
      %37 = dma.done [#allocation3], 128
    $region13: #{tpu_custom_call.1} parent=1 // pred_fallthru
      _
    // Predicated region
    $region14: #{tpu_custom_call.1} parent=1 // pred_check
      _
    $region15: #{tpu_custom_call.1} parent=1 // pred_check_branch
      %39 = sbr.rel (0) target = $region17
    $region16: #{tpu_custom_call.1} parent=1 // pred_region
      %41 = dma.done [#allocation6], 1536
    $region17: #{tpu_custom_call.1} parent=1 // pred_fallthru
      _
    %v43 = vld [vmem:[#allocation2] sm:$0xff]
    %v44 = vpack.c.bf16 %v43, %v43
    %v45 = vld [vmem:[#allocation5] sm:$0xf]
    %v46 = vld [vmem:[#allocation5 + $0x4] sm:$0xf]
    %v47 = vld [vmem:[#allocation5 + $0x8] sm:$0xf]
    %v48 = vld [vmem:[#allocation5 + $0xc] sm:$0xf]
    %v49 = vld [vmem:[#allocation5 + $0x10] sm:$0x1]
    %v50 = vunpack.c.l.bf16 %v49
    %v51 = vperm.slane %v50, 0
    %v56 = vunpack.c.l.b16 %v45
    %v57 = vunpack.c.l.b16 %v46
    %v58 = vunpack.c.l.b16 %v47
    %v59 = vunpack.c.l.b16 %v48
    %v60 = vpack.c.b16 %v57, %v56
    %v61 = vpack.c.b16 %v59, %v58
    %vm64 = vcmask 261120
    %v66 = vsel %vm64, %v44, 0
    %68 = vmatpush.bf16.msra.mxu0 0
    %69 = vmatpush.bf16.msra.mxu0 0
    %70 = vmatpush.bf16.msra.mxu0 0
    %71 = vmatpush.bf16.msra.mxu0 0
    %72 = vmatpush.bf16.msra.mxu0 0
    %73 = vmatpush.bf16.msra.mxu0 0
    %74 = vmatpush.bf16.msra.mxu0 %v61
    %75 = vmatpush.bf16.msra.mxu0 %v60
    %76 = vmatmul.bf16.gmra.mxu0 %v66
    %v77 = vpop.f32.mrf.mxu0
    %v78 = vadd.f32 %v51, %v77
    %v79 = vpop.f32.mrf.mxu0
    %80 = vdwg.mxu0
    %v81 = vmax.f32 %v78, 0.0
    %v82 = vld [vmem:[#allocation5 + $0x18] sm:$0xf]
    %v83 = vld [vmem:[#allocation5 + $0x1c] sm:$0xf]
    %v84 = vld [vmem:[#allocation5 + $0x20] sm:$0xf]
    %v85 = vld [vmem:[#allocation5 + $0x24] sm:$0xf]
    %v86 = vld [vmem:[#allocation5 + $0x28] sm:$0xf]
    %v87 = vld [vmem:[#allocation5 + $0x2c] sm:$0xf]
    %v88 = vld [vmem:[#allocation5 + $0x30] sm:$0xf]
    %v89 = vld [vmem:[#allocation5 + $0x34] sm:$0xf]
    %v90 = vld [vmem:[#allocation5 + $0x38] sm:$0xf]
    %v91 = vld [vmem:[#allocation5 + $0x3c] sm:$0xf]
    %v92 = vld [vmem:[#allocation5 + $0x40] sm:$0xf]
    %v93 = vld [vmem:[#allocation5 + $0x44] sm:$0xf]
    %v94 = vld [vmem:[#allocation5 + $0x48] sm:$0xf]
    %v95 = vld [vmem:[#allocation5 + $0x4c] sm:$0xf]
    %v96 = vld [vmem:[#allocation5 + $0x50] sm:$0xf]
    %v97 = vld [vmem:[#allocation5 + $0x54] sm:$0xf]
    %v98 = vld [vmem:[#allocation5 + $0x58] sm:$0x1]
    %v99 = vunpack.c.l.bf16 %v98
    %v100 = vpack.c.bf16 %v81, %v81
    %v101 = vperm.slane %v99, 0
    %v118 = vunpack.c.l.b16 %v82
    %v119 = vunpack.c.l.b16 %v83
    %v120 = vunpack.c.l.b16 %v84
    %v121 = vunpack.c.l.b16 %v85
    %v122 = vunpack.c.l.b16 %v86
    %v123 = vunpack.c.l.b16 %v87
    %v124 = vunpack.c.l.b16 %v88
    %v125 = vunpack.c.l.b16 %v89
    %v126 = vunpack.c.l.b16 %v90
    %v127 = vunpack.c.l.b16 %v91
    %v128 = vunpack.c.l.b16 %v92
    %v129 = vunpack.c.l.b16 %v93
    %v130 = vunpack.c.l.b16 %v94
    %v131 = vunpack.c.l.b16 %v95
    %v132 = vunpack.c.l.b16 %v96
    %v133 = vunpack.c.l.b16 %v97
    %v134 = vpack.c.b16 %v119, %v118
    %v135 = vpack.c.b16 %v121, %v120
    %v136 = vpack.c.b16 %v123, %v122
    %v137 = vpack.c.b16 %v125, %v124
    %v138 = vpack.c.b16 %v127, %v126
    %v139 = vpack.c.b16 %v129, %v128
    %v140 = vpack.c.b16 %v131, %v130
    %v141 = vpack.c.b16 %v133, %v132
    %150 = vmatpush.bf16.msra.mxu0 %v141
    %151 = vmatpush.bf16.msra.mxu0 %v140
    %152 = vmatpush.bf16.msra.mxu0 %v139
    %153 = vmatpush.bf16.msra.mxu0 %v138
    %154 = vmatpush.bf16.msra.mxu0 %v137
    %155 = vmatpush.bf16.msra.mxu0 %v136
    %156 = vmatpush.bf16.msra.mxu0 %v135
    %157 = vmatpush.bf16.msra.mxu0 %v134
    %158 = vmatmul.bf16.gmra.mxu0 %v100
    %v159 = vpop.f32.mrf.mxu0
    %v160 = vadd.f32 %v101, %v159
    %v161 = vpop.f32.mrf.mxu0
    %162 = vdwg.mxu0
    %163 = vmax.xlane.f32.xlu0 %v160
    %v164 = vpop.xlane.xlu0 %163
    %v165 = vsub.f32 %v160, %v164
    %v166 = vmul.f32 %v165, 1.442695
    %v167 = vpow.pop %v166
    %168 = vadd.xlane.f32.xlu0 %v167
    %v169 = vpop.xlane.xlu0 %168
    %v170 = vrcp.pop %v169
    %v171 = vmul.f32 %v169, %v170
    %v172 = vsub.f32 1.0, %v171
    %v173 = vmul.f32 %v170, %v172
    %v174 = vadd.f32 %v170, %v173
    %vm175 = vweird.f32 %v169
    %vm176 = vweird.f32 %v170
    %vm177 = vmor %vm175, %vm176
    %v178 = vsel %vm177, %v170, %v174
    %v179 = vand.u32 2147483647, %v169
    %vm180 = vcmp.eq.f32.partialorder %v179, 8.507059e+37
    %v181 = vand.u32 %v169, 2147483648
    %v182 = vor.u32 1.1754944e-38, %v181
    %v183 = vsel %vm180, %v182, %v178
    %v184 = vmul.f32 %v167, %v183
    %185 = vst [vmem:[#allocation7] sm:$0xff] %v184
    // Predicated region
    $region18: #{tpu_custom_call.1} parent=1 // pred_check
      _
    $region19: #{tpu_custom_call.1} parent=1 // pred_check_branch
      %187 = sbr.rel (0) target = $region21
    $region20: #{tpu_custom_call.1} parent=1 // pred_region
      %189 = vsyncadd [#allocation4], 0
      %s191 = sshll.u32 [#allocation7], 4
      %s192 = int_to_ptr.vmem [resolvable:$true] %s191
      %s193 = sshll.u32 %s2, 4
      %s194 = int_to_ptr.hbm [resolvable:$true] %s193
      %196 = dma.vmem_to_hbm [thread:$0]  %s192, 128, %s194, [#allocation4]
    $region21: #{tpu_custom_call.1} parent=1 // pred_fallthru
      _
    // Predicated region
    $region22: #{tpu_custom_call.1} parent=1 // pred_check
      _
    $region23: #{tpu_custom_call.1} parent=1 // pred_check_branch
      %198 = sbr.rel (0) target = $region25
    $region24: #{tpu_custom_call.1} parent=1 // pred_region
      %200 = dma.done [#allocation4], 128
    $region25: #{tpu_custom_call.1} parent=1 // pred_fallthru
      _
    %201 = vsyncpa [#allocation3], 1
    %202 = vsyncpa [#allocation6], 1
    %203 = vsyncpa [#allocation4], 1

</llo_original>
